<compile_context>
chip_gen: v6e
topology: v6e:2x2x1
jax: 0.10.0
libtpu: 0.0.40
codegen_flags: <defaults>
</compile_context>

<pallas_src>
import functools

import jax
import jax.numpy as jnp
from jax.experimental import pallas as pl
from jax.experimental.pallas import tpu as pltpu

_LANES = 128


def _adcf_kernel(x_ref, y_ref, out_ref, acc_ref, *, alpha, temp, n_true, tile_rows):
    # x_ref: (tr, 256) f32 block of the row-major (N, 2) log-posteriors
    #        (lane 2l   -> x[row*128+l, 0], lane 2l+1 -> x[row*128+l, 1])
    # y_ref: (tr, 128) int block of labels, y_ref[r, l] = y[row*128 + l]
    # acc_ref: (8, 128) f32 persistent VMEM accumulator
    step = pl.program_id(0)
    tr = tile_rows

    @pl.when(step == 0)
    def _():
        acc_ref[...] = jnp.zeros_like(acc_ref)

    # --- deinterleave the class-1 column on the (idle) MXU --------------------------------
    # Clip keeps +-inf log-posteriors out of the 0*inf NaN trap of the selection matmul;
    # sigmoid(temp*(0.5-exp(x))) is already fully saturated for |x| >= 80, so the loss is
    # unchanged.
    xb = jnp.clip(x_ref[...], -80.0, 80.0)
    c_idx = jax.lax.broadcasted_iota(jnp.int32, (2 * _LANES, _LANES), 0)
    l_idx = jax.lax.broadcasted_iota(jnp.int32, (2 * _LANES, _LANES), 1)
    sel = (c_idx == 2 * l_idx + 1).astype(jnp.float32)            # sel[c, l] = [c == 2l+1]
    x1 = jnp.dot(xb, sel, preferred_element_type=jnp.float32)     # (tr, 128) = x[:, 1], y-aligned

    # --- contributions (one exp + one tanh per element) -----------------------------------
    e = jnp.exp(x1)                                               # EUP
    # sigmoid(temp*(0.5-e)) == 0.5 + 0.5*tanh(0.5*temp*(0.5-e)); sigmoid(temp*(e-0.5)) == 1 - s_fn
    s_fn = 0.5 + 0.5 * jnp.tanh((0.5 * temp) * (0.5 - e))         # EUP
    y = y_ref[...]
    w = jnp.where(
        y == 1,
        alpha * s_fn,
        jnp.where(y == 0, (1.0 - alpha) * (1.0 - s_fn), jnp.float32(0.0)),
    )

    # Mask the tail and any ragged-block garbage rows against the true element count.
    row = jax.lax.broadcasted_iota(jnp.int32, (tr, _LANES), 0) + step * tr
    lane = jax.lax.broadcasted_iota(jnp.int32, (tr, _LANES), 1)
    valid = row * _LANES + lane < n_true
    contrib = jnp.where(valid, w, jnp.float32(0.0))

    # Reduce the tile to one (8,128) vreg with pure element-wise adds, then accumulate.
    acc_ref[...] += contrib.reshape(tr // 8, 8, _LANES).sum(axis=0)

    @pl.when(step == pl.num_programs(0) - 1)
    def _():
        # Single cross-lane/sublane reduction, once.  Division by N matches torch's
        # len(mask) == N for both the p_fn and p_fp terms.
        out_ref[0] = jnp.sum(acc_ref[...]) / jnp.float32(n_true)


def adcf_loss(x, y, fnr_weight=0.75, temp=40.0, tile_rows=1024):
    """x: (N, 2) float log class-posteriors, y: (N,) integer labels in {0, 1}.

    Returns a scalar float32 loss identical to the PyTorch aDcfLoss.forward.
    """
    assert x.ndim == 2 and x.shape[1] == 2, "x must have shape (N, 2)"
    n = int(x.shape[0])
    if n == 0:
        return jnp.float32(0.0)

    x = x.astype(jnp.float32)
    if not jnp.issubdtype(y.dtype, jnp.integer):
        y = y.astype(jnp.int32)

    rows = (n + _LANES - 1) // _LANES
    if n % _LANES != 0:
        # Fallback path only: pad to a whole 128-lane row so the reshape below is legal.
        pad = rows * _LANES - n
        x = jnp.pad(x, ((0, pad), (0, 0)))
        y = jnp.pad(y, ((0, pad),))
    # Copy-free, lane-dense views of the row-major buffers (no column slice, no transpose).
    x2 = x.reshape(rows, 2 * _LANES)
    y2 = y.reshape(rows, _LANES)

    # Tile rows: multiple of 32 (so any int label dtype's min tile is legal), clamped for small N.
    tr = min(int(tile_rows), ((rows + 31) // 32) * 32)
    tr = max(32, (tr // 32) * 32)
    n_tiles = (rows + tr - 1) // tr

    kernel = functools.partial(
        _adcf_kernel,
        alpha=float(fnr_weight),
        temp=float(temp),
        n_true=n,
        tile_rows=tr,
    )

    out = pl.pallas_call(
        kernel,
        out_shape=jax.ShapeDtypeStruct((1,), jnp.float32),
        grid_spec=pltpu.PrefetchScalarGridSpec(
            num_scalar_prefetch=0,
            grid=(n_tiles,),
            in_specs=[
                pl.BlockSpec((tr, 2 * _LANES), lambda i: (i, 0)),
                pl.BlockSpec((tr, _LANES), lambda i: (i, 0)),
            ],
            out_specs=pl.BlockSpec(memory_space=pltpu.SMEM),
            scratch_shapes=[pltpu.VMEM((8, _LANES), jnp.float32)],
        ),
        compiler_params=pltpu.CompilerParams(dimension_semantics=("arbitrary",)),
    )(x2, y2)
    return out[0]


def _adcf_ref(x, y, fnr_weight=0.75, temp=40.0):
    # Pure-JAX reference mirroring the PyTorch forward exactly.
    n = x.shape[0]
    e = jnp.exp(x[:, 1].astype(jnp.float32))
    p_fn = jnp.sum(jnp.where(y == 1, jax.nn.sigmoid(temp * (0.5 - e)), 0.0)) / n
    p_fp = jnp.sum(jnp.where(y == 0, jax.nn.sigmoid(temp * (e - 0.5)), 0.0)) / n
    return fnr_weight * p_fn + (1.0 - fnr_weight) * p_fp


if __name__ == "__main__":
    key = jax.random.PRNGKey(0)
    k1, k2, k3, k4, k5, k6 = jax.random.split(key, 6)

    # Case 1: tiny, unaligned (N % 128 != 0) -> pad fallback path, single grid step.
    N = 8
    x = jax.nn.log_softmax(jax.random.normal(k1, (N, 2), dtype=jnp.float32), axis=-1)
    y = jax.random.bernoulli(k2, 0.5, (N,)).astype(jnp.int32)
    loss = jax.block_until_ready(adcf_loss(x, y, fnr_weight=0.75, temp=40.0))
    ref = _adcf_ref(x, y, fnr_weight=0.75, temp=40.0)
    assert jnp.allclose(loss, ref, rtol=1e-5, atol=1e-6), (loss, ref)

    # Case 2: 128-aligned, copy-free view path, multi-step accumulation (tile_rows=32 -> 2 steps).
    N2 = 8192
    x2 = jax.nn.log_softmax(jax.random.normal(k3, (N2, 2), dtype=jnp.float32), axis=-1)
    y2 = jax.random.bernoulli(k4, 0.5, (N2,)).astype(jnp.int32)
    loss2 = jax.block_until_ready(adcf_loss(x2, y2, fnr_weight=0.75, temp=40.0, tile_rows=32))
    ref2 = _adcf_ref(x2, y2, fnr_weight=0.75, temp=40.0)
    assert jnp.allclose(loss2, ref2, rtol=1e-5, atol=1e-6), (loss2, ref2)

    # Case 3: unaligned, default tile size (ragged last block + tail mask).
    N3 = 3000
    x3 = jax.nn.log_softmax(jax.random.normal(k5, (N3, 2), dtype=jnp.float32), axis=-1)
    y3 = jax.random.bernoulli(k6, 0.5, (N3,)).astype(jnp.int32)
    loss3 = jax.block_until_ready(adcf_loss(x3, y3, fnr_weight=0.75, temp=40.0))
    ref3 = _adcf_ref(x3, y3, fnr_weight=0.75, temp=40.0)
    assert jnp.allclose(loss3, ref3, rtol=1e-5, atol=1e-6), (loss3, ref3)

    print("KERNEL_OK")
</pallas_src>

<mosaic_0001>
module attributes {stable_mosaic.version = 11 : i64} {
  func.func @_adcf_kernel(%arg0: i32, %arg1: memref<32x256xf32, #tpu.memory_space<vmem>>, %arg2: memref<32x128xi32, #tpu.memory_space<vmem>>, %arg3: memref<1xf32, #tpu.memory_space<smem>>, %arg4: memref<8x128xf32, #tpu.memory_space<vmem>>) attributes {dimension_semantics = [#tpu.dimension_semantics<arbitrary>], iteration_bounds = array<i64: 1>, scalar_prefetch = 0 : i64, scratch_operands = 1 : i64, tpu.core_type = #tpu.core_type<tc>, window_params = [{transform_indices = @transform_0, window_bounds = array<i64: 32, 256>}, {transform_indices = @transform_1, window_bounds = array<i64: 32, 128>}, {transform_indices = @transform_2, window_bounds = array<i64: 1>}]} {
    %c0_i32 = arith.constant 0 : i32
    %0 = arith.cmpi eq, %arg0, %c0_i32 : i32
    %1 = arith.extui %0 : i1 to i32
    %c0_i32_0 = arith.constant 0 : i32
    %2 = arith.cmpi ne, %1, %c0_i32_0 : i32
    scf.if %2 {
      %cst_24 = arith.constant 0.000000e+00 : f32
      %62 = vector.broadcast %cst_24 : f32 to vector<8x128xf32>
      %c0_25 = arith.constant 0 : index
      %c0_26 = arith.constant 0 : index
      %63 = vector.load %arg4[%c0_25, %c0_26] : memref<8x128xf32, #tpu.memory_space<vmem>>, vector<8x128xf32>
      tpu.vector_store %arg4[%c0_25, %c0_26], %62 {strides = array<i32>} : memref<8x128xf32, #tpu.memory_space<vmem>>, vector<8x128xf32>,
    } else {
    }
    %c0 = arith.constant 0 : index
    %c0_1 = arith.constant 0 : index
    %3 = vector.load %arg1[%c0, %c0_1] : memref<32x256xf32, #tpu.memory_space<vmem>>, vector<32x256xf32>
    %cst = arith.constant -8.000000e+01 : f32
    %cst_2 = arith.constant 8.000000e+01 : f32
    %4 = vector.broadcast %cst : f32 to vector<32x256xf32>
    %5 = arith.maximumf %4, %3 : vector<32x256xf32>
    %6 = vector.broadcast %cst_2 : f32 to vector<32x256xf32>
    %7 = arith.minimumf %6, %5 : vector<32x256xf32>
    %8 = tpu.iota {dimensions = array<i32: 0>} : vector<256x128xi32>
    %9 = tpu.iota {dimensions = array<i32: 1>} : vector<256x128xi32>
    %c2_i32 = arith.constant 2 : i32
    %10 = vector.broadcast %c2_i32 : i32 to vector<256x128xi32>
    %11 = arith.muli %10, %9 : vector<256x128xi32>
    %c1_i32 = arith.constant 1 : i32
    %12 = vector.broadcast %c1_i32 : i32 to vector<256x128xi32>
    %13 = arith.addi %11, %12 : vector<256x128xi32>
    %14 = arith.cmpi eq, %8, %13 : vector<256x128xi32>
    %15 = arith.extui %14 : vector<256x128xi1> to vector<256x128xi32>
    %16 = arith.sitofp %15 : vector<256x128xi32> to vector<256x128xf32>
    %cst_3 = arith.constant dense<0.000000e+00> : vector<32x128xf32>
    %17 = tpu.matmul %7, %16, %cst_3 {dimension_numbers = #tpu.dot_dimension_numbers<[1], [0], [0], [1], [0, 0, 1, 1], [], []>} : vector<32x256xf32>, vector<256x128xf32>, vector<32x128xf32> -> vector<32x128xf32>
    %18 = math.exp %17 : vector<32x128xf32>
    %cst_4 = arith.constant 5.000000e-01 : f32
    %19 = vector.broadcast %cst_4 : f32 to vector<32x128xf32>
    %20 = arith.subf %19, %18 : vector<32x128xf32>
    %cst_5 = arith.constant 2.000000e+01 : f32
    %21 = vector.broadcast %cst_5 : f32 to vector<32x128xf32>
    %22 = arith.mulf %21, %20 : vector<32x128xf32>
    %23 = math.tanh %22 : vector<32x128xf32>
    %cst_6 = arith.constant 5.000000e-01 : f32
    %24 = vector.broadcast %cst_6 : f32 to vector<32x128xf32>
    %25 = arith.mulf %24, %23 : vector<32x128xf32>
    %cst_7 = arith.constant 5.000000e-01 : f32
    %26 = vector.broadcast %cst_7 : f32 to vector<32x128xf32>
    %27 = arith.addf %26, %25 : vector<32x128xf32>
    %c0_8 = arith.constant 0 : index
    %c0_9 = arith.constant 0 : index
    %28 = vector.load %arg2[%c0_8, %c0_9] : memref<32x128xi32, #tpu.memory_space<vmem>>, vector<32x128xi32>
    %c1_i32_10 = arith.constant 1 : i32
    %29 = vector.broadcast %c1_i32_10 : i32 to vector<32x128xi32>
    %30 = arith.cmpi eq, %28, %29 : vector<32x128xi32>
    %cst_11 = arith.constant 7.500000e-01 : f32
    %31 = vector.broadcast %cst_11 : f32 to vector<32x128xf32>
    %32 = arith.mulf %31, %27 : vector<32x128xf32>
    %c0_i32_12 = arith.constant 0 : i32
    %33 = vector.broadcast %c0_i32_12 : i32 to vector<32x128xi32>
    %34 = arith.cmpi eq, %28, %33 : vector<32x128xi32>
    %cst_13 = arith.constant 1.000000e+00 : f32
    %35 = vector.broadcast %cst_13 : f32 to vector<32x128xf32>
    %36 = arith.subf %35, %27 : vector<32x128xf32>
    %cst_14 = arith.constant 2.500000e-01 : f32
    %37 = vector.broadcast %cst_14 : f32 to vector<32x128xf32>
    %38 = arith.mulf %37, %36 : vector<32x128xf32>
    %cst_15 = arith.constant 0.000000e+00 : f32
    %39 = vector.broadcast %cst_15 : f32 to vector<32x128xf32>
    %40 = arith.select %34, %38, %39 : vector<32x128xi1>, vector<32x128xf32>
    %41 = arith.select %30, %32, %40 : vector<32x128xi1>, vector<32x128xf32>
    %42 = tpu.iota {dimensions = array<i32: 0>} : vector<32x128xi32>
    %c32_i32 = arith.constant 32 : i32
    %43 = arith.muli %arg0, %c32_i32 : i32
    %44 = vector.broadcast %43 : i32 to vector<32x128xi32>
    %45 = arith.addi %42, %44 : vector<32x128xi32>
    %46 = tpu.iota {dimensions = array<i32: 1>} : vector<32x128xi32>
    %c128_i32 = arith.constant 128 : i32
    %47 = vector.broadcast %c128_i32 : i32 to vector<32x128xi32>
    %48 = arith.muli %45, %47 : vector<32x128xi32>
    %49 = arith.addi %48, %46 : vector<32x128xi32>
    %c8_i32 = arith.constant 8 : i32
    %50 = vector.broadcast %c8_i32 : i32 to vector<32x128xi32>
    %51 = arith.cmpi slt, %49, %50 : vector<32x128xi32>
    %cst_16 = arith.constant 0.000000e+00 : f32
    %52 = vector.broadcast %cst_16 : f32 to vector<32x128xf32>
    %53 = arith.select %51, %41, %52 : vector<32x128xi1>, vector<32x128xf32>
    %c0_17 = arith.constant 0 : index
    %c0_18 = arith.constant 0 : index
    %54 = vector.load %arg4[%c0_17, %c0_18] : memref<8x128xf32, #tpu.memory_space<vmem>>, vector<8x128xf32>
    %55 = vector.shape_cast %53 : vector<32x128xf32> to vector<4x8x128xf32>
    %cst_19 = arith.constant dense<0.000000e+00> : vector<8x128xf32>
    %56 = vector.multi_reduction <add>, %55, %cst_19 [0] : vector<4x8x128xf32> to vector<8x128xf32>
    %57 = arith.addf %54, %56 : vector<8x128xf32>
    %c0_20 = arith.constant 0 : index
    %c0_21 = arith.constant 0 : index
    %58 = vector.load %arg4[%c0_20, %c0_21] : memref<8x128xf32, #tpu.memory_space<vmem>>, vector<8x128xf32>
    tpu.vector_store %arg4[%c0_20, %c0_21], %57 {strides = array<i32>} : memref<8x128xf32, #tpu.memory_space<vmem>>, vector<8x128xf32>,
    %c0_i32_22 = arith.constant 0 : i32
    %59 = arith.cmpi eq, %arg0, %c0_i32_22 : i32
    %60 = arith.extui %59 : i1 to i32
    %c0_i32_23 = arith.constant 0 : i32
    %61 = arith.cmpi ne, %60, %c0_i32_23 : i32
    scf.if %61 {
      %c0_24 = arith.constant 0 : index
      %c0_25 = arith.constant 0 : index
      %62 = vector.load %arg4[%c0_24, %c0_25] : memref<8x128xf32, #tpu.memory_space<vmem>>, vector<8x128xf32>
      %63 = vector.shape_cast %62 : vector<8x128xf32> to vector<1x8x128xf32>
      %cst_26 = arith.constant dense<0.000000e+00> : vector<1xf32>
      %64 = vector.multi_reduction <add>, %63, %cst_26 [1, 2] : vector<1x8x128xf32> to vector<1xf32>
      %65 = vector.shape_cast %64 : vector<1xf32> to vector<1x1x1xf32>
      %66 = vector.extract %65[0, 0, 0] : f32 from vector<1x1x1xf32>
      %cst_27 = arith.constant 8.000000e+00 : f32
      %67 = arith.divf %66, %cst_27 : f32
      %c0_28 = arith.constant 0 : index
      %68 = memref.load %arg3[%c0_28] : memref<1xf32, #tpu.memory_space<smem>>
      memref.store %67, %arg3[%c0_28] : memref<1xf32, #tpu.memory_space<smem>>
    } else {
    }
    return
  }
  func.func @transform_0(%arg0: i32) -> (i32, i32) {
    %c0_i32 = arith.constant 0 : i32
    %c0_i32_0 = arith.constant 0 : i32
    return %arg0, %c0_i32 : i32, i32
  }
  func.func @transform_1(%arg0: i32) -> (i32, i32) {
    %c0_i32 = arith.constant 0 : i32
    %c0_i32_0 = arith.constant 0 : i32
    return %arg0, %c0_i32 : i32, i32
  }
  func.func @transform_2(%arg0: i32) -> i32 {
    %c0_i32 = arith.constant 0 : i32
    %c0_i32_0 = arith.constant 0 : i32
    return %c0_i32 : i32
  }
}

</mosaic_0001>

<llo_original>
// kernel: tpu_custom_call.1
$region0: #{tpu_custom_call.1}
  #allocation0 [shape = 'u32[]', space=smem, size = 0x4, offset = 0x4, fixed_abs, tag = 'smem constant byte address 0x4 - core index']
  #allocation1 [shape = 'u32[144,128]{1,0:T(1,128)}', space=vmem, size = 0x12000, scoped, tag = 'internal scratch']
  #allocation2 [shape = 'f32[8,128]{1,0:T(8,128)}', space=vmem, size = 0x1000, scoped, tag = 'scratch operand']
  %s0 = inlined_call_operand.hbm [shape: f32[1,256], index: 0, kind: input, shape index: {}]
  %s1 = inlined_call_operand.vmem [shape: s32[1,128], index: 1, kind: input, shape index: {}]
  %s2 = inlined_call_operand.hbm [shape: f32[1], index: 2, kind: output, shape index: {}]
  %s3 = sld [smem:[#allocation0]]
  $region30: #{tpu_custom_call.1} parent=0
    _
  %s5 = ssub.s32 1, %s3
  %s6 = scalar_select 0, %s5, %s3
  $region1: #{tpu_custom_call.1} parent=0
    #allocation3 [shape = 'u8[32768]{0}', space=vmem, size = 0x8000, scoped, tag = 'input window, operand 0, single buffered']
    #allocation4 [shape = 's32[1]{0}', space=sflag, size = 0x4, scoped, tag = 'scoped memory for tpu_custom_call.1']
    #allocation5 [shape = 's32[1]{0}', space=sflag, size = 0x4, scoped, tag = 'scoped memory for tpu_custom_call.1']
    #allocation6 [shape = 'u8[512]{0}', space=smem, size = 0x200, scoped, tag = 'output window, operand 0, single buffered']
    %7 = vsyncpa [#allocation4], 0
    %8 = vsyncpa [#allocation5], 0
    // Predicated region
    $region2: #{tpu_custom_call.1} parent=1 // pred_check
      _
    $region3: #{tpu_custom_call.1} parent=1 // pred_check_branch
      %10 = sbr.rel (0) target = $region5
    $region4: #{tpu_custom_call.1} parent=1 // pred_region
      %s12 = ssub.s32 1024, 32
      %13 = vsyncadd [#allocation4], %s12
      %s14 = sshll.u32 [#allocation3], 4
      %s15 = int_to_ptr.vmem [resolvable:$true] %s14
      %20 = dma.hbm_to_vmem [thread:$0]  %s0, 32, %s15, [#allocation4], 32, 32, 2
    $region5: #{tpu_custom_call.1} parent=1 // pred_fallthru
      _
    // Predicated region
    $region6: #{tpu_custom_call.1} parent=1 // pred_check
      _
    $region7: #{tpu_custom_call.1} parent=1 // pred_check_branch
      %22 = sbr.rel (0) target = $region9
    $region8: #{tpu_custom_call.1} parent=1 // pred_region
      _
    $region9: #{tpu_custom_call.1} parent=1 // pred_fallthru
      _
    // Predicated region
    $region10: #{tpu_custom_call.1} parent=1 // pred_check
      _
    $region11: #{tpu_custom_call.1} parent=1 // pred_check_branch
      %24 = sbr.rel (0) target = $region13
    $region12: #{tpu_custom_call.1} parent=1 // pred_region
      %25 = dma.done [#allocation4], 1024
    $region13: #{tpu_custom_call.1} parent=1 // pred_fallthru
      _
    %p26 = scmp.eq.s32.totalorder 0, 0
    // Predicated region
    $region14: #{tpu_custom_call.1} parent=1 // pred_check
      %p27 = pneg %p26
    $region15: #{tpu_custom_call.1} parent=1 // pred_check_branch
      %29 = sbr.rel (%p27) target = $region17
    $region16: #{tpu_custom_call.1} parent=1 // pred_region
      %30 = vst [vmem:[#allocation2] sm:$0xff] 0.0
    $region17: #{tpu_custom_call.1} parent=1 // pred_fallthru
      _
    %v31 = vld [vmem:[#allocation3] sm:$0x3]
    %v32 = vld [vmem:[#allocation3 + $0x2] sm:$0x3]
    %v33 = vld [vmem:[#allocation3 + $0x4] sm:$0x3]
    %v34 = vld [vmem:[#allocation3 + $0x6] sm:$0x3]
    %v35 = vld [vmem:[#allocation3 + $0x8] sm:$0x3]
    %v36 = vld [vmem:[#allocation3 + $0xa] sm:$0x3]
    %v37 = vld [vmem:[#allocation3 + $0xc] sm:$0x3]
    %v38 = vld [vmem:[#allocation3 + $0xe] sm:$0x3]
    %v39 = vld [vmem:[#allocation3 + $0x10] sm:$0x3]
    %v40 = vld [vmem:[#allocation3 + $0x12] sm:$0x3]
    %v41 = vld [vmem:[#allocation3 + $0x14] sm:$0x3]
    %v42 = vld [vmem:[#allocation3 + $0x16] sm:$0x3]
    %v43 = vld [vmem:[#allocation3 + $0x18] sm:$0x3]
    %v44 = vld [vmem:[#allocation3 + $0x1a] sm:$0x3]
    %v45 = vld [vmem:[#allocation3 + $0x1c] sm:$0x3]
    %v46 = vld [vmem:[#allocation3 + $0x1e] sm:$0x3]
    %v47 = vld [vmem:[#allocation3 + $0x20] sm:$0x3]
    %v48 = vld [vmem:[#allocation3 + $0x22] sm:$0x3]
    %v49 = vld [vmem:[#allocation3 + $0x24] sm:$0x3]
    %v50 = vld [vmem:[#allocation3 + $0x26] sm:$0x3]
    %v51 = vld [vmem:[#allocation3 + $0x28] sm:$0x3]
    %v52 = vld [vmem:[#allocation3 + $0x2a] sm:$0x3]
    %v53 = vld [vmem:[#allocation3 + $0x2c] sm:$0x3]
    %v54 = vld [vmem:[#allocation3 + $0x2e] sm:$0x3]
    %v55 = vld [vmem:[#allocation3 + $0x30] sm:$0x3]
    %v56 = vld [vmem:[#allocation3 + $0x32] sm:$0x3]
    %v57 = vld [vmem:[#allocation3 + $0x34] sm:$0x3]
    %v58 = vld [vmem:[#allocation3 + $0x36] sm:$0x3]
    %v59 = vld [vmem:[#allocation3 + $0x38] sm:$0x3]
    %v60 = vld [vmem:[#allocation3 + $0x3a] sm:$0x3]
    %v61 = vld [vmem:[#allocation3 + $0x3c] sm:$0x3]
    %v62 = vld [vmem:[#allocation3 + $0x3e] sm:$0x3]
    %v63 = vmax.f32 %v31, -80.0
    %v64 = vmax.f32 %v32, -80.0
    %v65 = vmax.f32 %v33, -80.0
    %v66 = vmax.f32 %v34, -80.0
    %v67 = vmax.f32 %v35, -80.0
    %v68 = vmax.f32 %v36, -80.0
    %v69 = vmax.f32 %v37, -80.0
    %v70 = vmax.f32 %v38, -80.0
    %v71 = vmax.f32 %v39, -80.0
    %v72 = vmax.f32 %v40, -80.0
    %v73 = vmax.f32 %v41, -80.0
    %v74 = vmax.f32 %v42, -80.0
    %v75 = vmax.f32 %v43, -80.0
    %v76 = vmax.f32 %v44, -80.0
    %v77 = vmax.f32 %v45, -80.0
    %v78 = vmax.f32 %v46, -80.0
    %v79 = vmax.f32 %v47, -80.0
    %v80 = vmax.f32 %v48, -80.0
    %v81 = vmax.f32 %v49, -80.0
    %v82 = vmax.f32 %v50, -80.0
    %v83 = vmax.f32 %v51, -80.0
    %v84 = vmax.f32 %v52, -80.0
    %v85 = vmax.f32 %v53, -80.0
    %v86 = vmax.f32 %v54, -80.0
    %v87 = vmax.f32 %v55, -80.0
    %v88 = vmax.f32 %v56, -80.0
    %v89 = vmax.f32 %v57, -80.0
    %v90 = vmax.f32 %v58, -80.0
    %v91 = vmax.f32 %v59, -80.0
    %v92 = vmax.f32 %v60, -80.0
    %v93 = vmax.f32 %v61, -80.0
    %v94 = vmax.f32 %v62, -80.0
    %v95 = vmin.f32 %v63, 80.0
    %v96 = vmin.f32 %v64, 80.0
    %v97 = vmin.f32 %v65, 80.0
    %v98 = vmin.f32 %v66, 80.0
    %v99 = vmin.f32 %v67, 80.0
    %v100 = vmin.f32 %v68, 80.0
    %v101 = vmin.f32 %v69, 80.0
    %v102 = vmin.f32 %v70, 80.0
    %v103 = vmin.f32 %v71, 80.0
    %v104 = vmin.f32 %v72, 80.0
    %v105 = vmin.f32 %v73, 80.0
    %v106 = vmin.f32 %v74, 80.0
    %v107 = vmin.f32 %v75, 80.0
    %v108 = vmin.f32 %v76, 80.0
    %v109 = vmin.f32 %v77, 80.0
    %v110 = vmin.f32 %v78, 80.0
    %v111 = vmin.f32 %v79, 80.0
    %v112 = vmin.f32 %v80, 80.0
    %v113 = vmin.f32 %v81, 80.0
    %v114 = vmin.f32 %v82, 80.0
    %v115 = vmin.f32 %v83, 80.0
    %v116 = vmin.f32 %v84, 80.0
    %v117 = vmin.f32 %v85, 80.0
    %v118 = vmin.f32 %v86, 80.0
    %v119 = vmin.f32 %v87, 80.0
    %v120 = vmin.f32 %v88, 80.0
    %v121 = vmin.f32 %v89, 80.0
    %v122 = vmin.f32 %v90, 80.0
    %v123 = vmin.f32 %v91, 80.0
    %v124 = vmin.f32 %v92, 80.0
    %v125 = vmin.f32 %v93, 80.0
    %v126 = vmin.f32 %v94, 80.0
    %v127 = vlaneseq
    %v128 = vshrl.u32 %v127, 7
    %v129 = vadd.s32 %v128, 8
    %v130 = vadd.s32 %v128, 16
    %v131 = vadd.s32 %v128, 24
    %v132 = vadd.s32 %v128, 32
    %v133 = vadd.s32 %v128, 40
    %v134 = vadd.s32 %v128, 48
    %v135 = vadd.s32 %v128, 56
    %v136 = vadd.s32 %v128, 64
    %v137 = vadd.s32 %v128, 72
    %v138 = vadd.s32 %v128, 80
    %v139 = vadd.s32 %v128, 88
    %v140 = vadd.s32 %v128, 96
    %v141 = vadd.s32 %v128, 104
    %v142 = vadd.s32 %v128, 112
    %v143 = vadd.s32 %v128, 120
    %v144 = vadd.s32 %v128, 128
    %v145 = vadd.s32 %v128, 136
    %v146 = vadd.s32 %v128, 144
    %v147 = vadd.s32 %v128, 152
    %v148 = vadd.s32 %v128, 160
    %v149 = vadd.s32 %v128, 168
    %v150 = vadd.s32 %v128, 176
    %v151 = vadd.s32 %v128, 184
    %v152 = vadd.s32 %v128, 192
    %v153 = vadd.s32 %v128, 200
    %v154 = vadd.s32 %v128, 208
    %v155 = vadd.s32 %v128, 216
    %v156 = vadd.s32 %v128, 224
    %v157 = vadd.s32 %v128, 232
    %v158 = vadd.s32 %v128, 240
    %v159 = vadd.s32 %v128, 248
    %v160 = vlaneseq
    %v161 = vand.u32 %v160, 127
    %v162 = vmul.u32 %v161, 2
    %v163 = vadd.s32 %v162, 1
    %vm164 = vcmp.eq.s32.totalorder %v128, %v163
    %vm165 = vcmp.eq.s32.totalorder %v129, %v163
    %vm166 = vcmp.eq.s32.totalorder %v130, %v163
    %vm167 = vcmp.eq.s32.totalorder %v131, %v163
    %vm168 = vcmp.eq.s32.totalorder %v132, %v163
    %vm169 = vcmp.eq.s32.totalorder %v133, %v163
    %vm170 = vcmp.eq.s32.totalorder %v134, %v163
    %vm171 = vcmp.eq.s32.totalorder %v135, %v163
    %vm172 = vcmp.eq.s32.totalorder %v136, %v163
    %vm173 = vcmp.eq.s32.totalorder %v137, %v163
    %vm174 = vcmp.eq.s32.totalorder %v138, %v163
    %vm175 = vcmp.eq.s32.totalorder %v139, %v163
    %vm176 = vcmp.eq.s32.totalorder %v140, %v163
    %vm177 = vcmp.eq.s32.totalorder %v141, %v163
    %vm178 = vcmp.eq.s32.totalorder %v142, %v163
    %vm179 = vcmp.eq.s32.totalorder %v143, %v163
    %vm180 = vcmp.eq.s32.totalorder %v144, %v163
    %vm181 = vcmp.eq.s32.totalorder %v145, %v163
    %vm182 = vcmp.eq.s32.totalorder %v146, %v163
    %vm183 = vcmp.eq.s32.totalorder %v147, %v163
    %vm184 = vcmp.eq.s32.totalorder %v148, %v163
    %vm185 = vcmp.eq.s32.totalorder %v149, %v163
    %vm186 = vcmp.eq.s32.totalorder %v150, %v163
    %vm187 = vcmp.eq.s32.totalorder %v151, %v163
    %vm188 = vcmp.eq.s32.totalorder %v152, %v163
    %vm189 = vcmp.eq.s32.totalorder %v153, %v163
    %vm190 = vcmp.eq.s32.totalorder %v154, %v163
    %vm191 = vcmp.eq.s32.totalorder %v155, %v163
    %vm192 = vcmp.eq.s32.totalorder %v156, %v163
    %vm193 = vcmp.eq.s32.totalorder %v157, %v163
    %vm194 = vcmp.eq.s32.totalorder %v158, %v163
    %vm195 = vcmp.eq.s32.totalorder %v159, %v163
    %v196 = vsel %vm164, 1, 0
    %v197 = vsel %vm165, 1, 0
    %v198 = vsel %vm166, 1, 0
    %v199 = vsel %vm167, 1, 0
    %v200 = vsel %vm168, 1, 0
    %v201 = vsel %vm169, 1, 0
    %v202 = vsel %vm170, 1, 0
    %v203 = vsel %vm171, 1, 0
    %v204 = vsel %vm172, 1, 0
    %v205 = vsel %vm173, 1, 0
    %v206 = vsel %vm174, 1, 0
    %v207 = vsel %vm175, 1, 0
    %v208 = vsel %vm176, 1, 0
    %v209 = vsel %vm177, 1, 0
    %v210 = vsel %vm178, 1, 0
    %v211 = vsel %vm179, 1, 0
    %v212 = vsel %vm180, 1, 0
    %v213 = vsel %vm181, 1, 0
    %v214 = vsel %vm182, 1, 0
    %v215 = vsel %vm183, 1, 0
    %v216 = vsel %vm184, 1, 0
    %v217 = vsel %vm185, 1, 0
    %v218 = vsel %vm186, 1, 0
    %v219 = vsel %vm187, 1, 0
    %v220 = vsel %vm188, 1, 0
    %v221 = vsel %vm189, 1, 0
    %v222 = vsel %vm190, 1, 0
    %v223 = vsel %vm191, 1, 0
    %v224 = vsel %vm192, 1, 0
    %v225 = vsel %vm193, 1, 0
    %v226 = vsel %vm194, 1, 0
    %v227 = vsel %vm195, 1, 0
    %v228 = vcvt.s32.f32 %v196
    %v229 = vcvt.s32.f32 %v197
    %v230 = vcvt.s32.f32 %v198
    %v231 = vcvt.s32.f32 %v199
    %v232 = vcvt.s32.f32 %v200
    %v233 = vcvt.s32.f32 %v201
    %v234 = vcvt.s32.f32 %v202
    %v235 = vcvt.s32.f32 %v203
    %v236 = vcvt.s32.f32 %v204
    %v237 = vcvt.s32.f32 %v205
    %v238 = vcvt.s32.f32 %v206
    %v239 = vcvt.s32.f32 %v207
    %v240 = vcvt.s32.f32 %v208
    %v241 = vcvt.s32.f32 %v209
    %v242 = vcvt.s32.f32 %v210
    %v243 = vcvt.s32.f32 %v211
    %v244 = vcvt.s32.f32 %v212
    %v245 = vcvt.s32.f32 %v213
    %v246 = vcvt.s32.f32 %v214
    %v247 = vcvt.s32.f32 %v215
    %v248 = vcvt.s32.f32 %v216
    %v249 = vcvt.s32.f32 %v217
    %v250 = vcvt.s32.f32 %v218
    %v251 = vcvt.s32.f32 %v219
    %v252 = vcvt.s32.f32 %v220
    %v253 = vcvt.s32.f32 %v221
    %v254 = vcvt.s32.f32 %v222
    %v255 = vcvt.s32.f32 %v223
    %v256 = vcvt.s32.f32 %v224
    %v257 = vcvt.s32.f32 %v225
    %v258 = vcvt.s32.f32 %v226
    %v259 = vcvt.s32.f32 %v227
    %v292 = vcombine.low %v95, %v96
    %v293 = vcombine.low %v97, %v98
    %v294 = vcombine.low %v99, %v100
    %v295 = vcombine.low %v101, %v102
    %v297 = vunpack.c.l.s4 1966171168
    %v298 = vunpack.c.0.s8 %v297
    %v299 = vlaneseq
    %v300 = vshrl.u32 %v299, 7
    %v301 = vsub.s32 %v298, %v300
    %v302 = vrot.slane %v292, %v301
    %v304 = vunpack.c.l.s4 1966171168
    %v305 = vunpack.c.0.s8 %v304
    %v306 = vlaneseq
    %v307 = vshrl.u32 %v306, 7
    %v308 = vsub.s32 %v305, %v307
    %v309 = vrot.slane %v293, %v308
    %v311 = vunpack.c.l.s4 1966171168
    %v312 = vunpack.c.0.s8 %v311
    %v313 = vlaneseq
    %v314 = vshrl.u32 %v313, 7
    %v315 = vsub.s32 %v312, %v314
    %v316 = vrot.slane %v294, %v315
    %v318 = vunpack.c.l.s4 1966171168
    %v319 = vunpack.c.0.s8 %v318
    %v320 = vlaneseq
    %v321 = vshrl.u32 %v320, 7
    %v322 = vsub.s32 %v319, %v321
    %v323 = vrot.slane %v295, %v322
    %v324 = vcombine.low %v302, %v309
    %v325 = vcombine.high %v302, %v309
    %v326 = vcombine.low %v316, %v323
    %v327 = vcombine.high %v316, %v323
    %v329 = vunpack.c.l.s4 1966171168
    %v330 = vunpack.c.0.s8 %v329
    %v331 = vlaneseq
    %v332 = vshrl.u32 %v331, 7
    %v333 = vsub.s32 %v330, %v332
    %v334 = vrot.slane %v324, %v333
    %v336 = vunpack.c.l.s4 1966171168
    %v337 = vunpack.c.0.s8 %v336
    %v338 = vlaneseq
    %v339 = vshrl.u32 %v338, 7
    %v340 = vsub.s32 %v337, %v339
    %v341 = vrot.slane %v325, %v340
    %v343 = vunpack.c.l.s4 1966171168
    %v344 = vunpack.c.0.s8 %v343
    %v345 = vlaneseq
    %v346 = vshrl.u32 %v345, 7
    %v347 = vsub.s32 %v344, %v346
    %v348 = vrot.slane %v326, %v347
    %v350 = vunpack.c.l.s4 1966171168
    %v351 = vunpack.c.0.s8 %v350
    %v352 = vlaneseq
    %v353 = vshrl.u32 %v352, 7
    %v354 = vsub.s32 %v351, %v353
    %v355 = vrot.slane %v327, %v354
    %v356 = vcombine.low %v334, %v348
    %v357 = vcombine.low %v341, %v355
    %v358 = vcombine.low %v103, %v104
    %v359 = vcombine.low %v105, %v106
    %v360 = vcombine.low %v107, %v108
    %v361 = vcombine.low %v109, %v110
    %v363 = vunpack.c.l.s4 1966171168
    %v364 = vunpack.c.0.s8 %v363
    %v365 = vlaneseq
    %v366 = vshrl.u32 %v365, 7
    %v367 = vsub.s32 %v364, %v366
    %v368 = vrot.slane %v358, %v367
    %v370 = vunpack.c.l.s4 1966171168
    %v371 = vunpack.c.0.s8 %v370
    %v372 = vlaneseq
    %v373 = vshrl.u32 %v372, 7
    %v374 = vsub.s32 %v371, %v373
    %v375 = vrot.slane %v359, %v374
    %v377 = vunpack.c.l.s4 1966171168
    %v378 = vunpack.c.0.s8 %v377
    %v379 = vlaneseq
    %v380 = vshrl.u32 %v379, 7
    %v381 = vsub.s32 %v378, %v380
    %v382 = vrot.slane %v360, %v381
    %v384 = vunpack.c.l.s4 1966171168
    %v385 = vunpack.c.0.s8 %v384
    %v386 = vlaneseq
    %v387 = vshrl.u32 %v386, 7
    %v388 = vsub.s32 %v385, %v387
    %v389 = vrot.slane %v361, %v388
    %v390 = vcombine.low %v368, %v375
    %v391 = vcombine.high %v368, %v375
    %v392 = vcombine.low %v382, %v389
    %v393 = vcombine.high %v382, %v389
    %v395 = vunpack.c.l.s4 1966171168
    %v396 = vunpack.c.0.s8 %v395
    %v397 = vlaneseq
    %v398 = vshrl.u32 %v397, 7
    %v399 = vsub.s32 %v396, %v398
    %v400 = vrot.slane %v390, %v399
    %v402 = vunpack.c.l.s4 1966171168
    %v403 = vunpack.c.0.s8 %v402
    %v404 = vlaneseq
    %v405 = vshrl.u32 %v404, 7
    %v406 = vsub.s32 %v403, %v405
    %v407 = vrot.slane %v391, %v406
    %v409 = vunpack.c.l.s4 1966171168
    %v410 = vunpack.c.0.s8 %v409
    %v411 = vlaneseq
    %v412 = vshrl.u32 %v411, 7
    %v413 = vsub.s32 %v410, %v412
    %v414 = vrot.slane %v392, %v413
    %v416 = vunpack.c.l.s4 1966171168
    %v417 = vunpack.c.0.s8 %v416
    %v418 = vlaneseq
    %v419 = vshrl.u32 %v418, 7
    %v420 = vsub.s32 %v417, %v419
    %v421 = vrot.slane %v393, %v420
    %v422 = vcombine.low %v400, %v414
    %v423 = vcombine.low %v407, %v421
    %v424 = vcombine.low %v111, %v112
    %v425 = vcombine.low %v113, %v114
    %v426 = vcombine.low %v115, %v116
    %v427 = vcombine.low %v117, %v118
    %v429 = vunpack.c.l.s4 1966171168
    %v430 = vunpack.c.0.s8 %v429
    %v431 = vlaneseq
    %v432 = vshrl.u32 %v431, 7
    %v433 = vsub.s32 %v430, %v432
    %v434 = vrot.slane %v424, %v433
    %v436 = vunpack.c.l.s4 1966171168
    %v437 = vunpack.c.0.s8 %v436
    %v438 = vlaneseq
    %v439 = vshrl.u32 %v438, 7
    %v440 = vsub.s32 %v437, %v439
    %v441 = vrot.slane %v425, %v440
    %v443 = vunpack.c.l.s4 1966171168
    %v444 = vunpack.c.0.s8 %v443
    %v445 = vlaneseq
    %v446 = vshrl.u32 %v445, 7
    %v447 = vsub.s32 %v444, %v446
    %v448 = vrot.slane %v426, %v447
    %v450 = vunpack.c.l.s4 1966171168
    %v451 = vunpack.c.0.s8 %v450
    %v452 = vlaneseq
    %v453 = vshrl.u32 %v452, 7
    %v454 = vsub.s32 %v451, %v453
    %v455 = vrot.slane %v427, %v454
    %v456 = vcombine.low %v434, %v441
    %v457 = vcombine.high %v434, %v441
    %v458 = vcombine.low %v448, %v455
    %v459 = vcombine.high %v448, %v455
    %v461 = vunpack.c.l.s4 1966171168
    %v462 = vunpack.c.0.s8 %v461
    %v463 = vlaneseq
    %v464 = vshrl.u32 %v463, 7
    %v465 = vsub.s32 %v462, %v464
    %v466 = vrot.slane %v456, %v465
    %v468 = vunpack.c.l.s4 1966171168
    %v469 = vunpack.c.0.s8 %v468
    %v470 = vlaneseq
    %v471 = vshrl.u32 %v470, 7
    %v472 = vsub.s32 %v469, %v471
    %v473 = vrot.slane %v457, %v472
    %v475 = vunpack.c.l.s4 1966171168
    %v476 = vunpack.c.0.s8 %v475
    %v477 = vlaneseq
    %v478 = vshrl.u32 %v477, 7
    %v479 = vsub.s32 %v476, %v478
    %v480 = vrot.slane %v458, %v479
    %v482 = vunpack.c.l.s4 1966171168
    %v483 = vunpack.c.0.s8 %v482
    %v484 = vlaneseq
    %v485 = vshrl.u32 %v484, 7
    %v486 = vsub.s32 %v483, %v485
    %v487 = vrot.slane %v459, %v486
    %v488 = vcombine.low %v466, %v480
    %v489 = vcombine.low %v473, %v487
    %v490 = vcombine.low %v119, %v120
    %v491 = vcombine.low %v121, %v122
    %v492 = vcombine.low %v123, %v124
    %v493 = vcombine.low %v125, %v126
    %v495 = vunpack.c.l.s4 1966171168
    %v496 = vunpack.c.0.s8 %v495
    %v497 = vlaneseq
    %v498 = vshrl.u32 %v497, 7
    %v499 = vsub.s32 %v496, %v498
    %v500 = vrot.slane %v490, %v499
    %v502 = vunpack.c.l.s4 1966171168
    %v503 = vunpack.c.0.s8 %v502
    %v504 = vlaneseq
    %v505 = vshrl.u32 %v504, 7
    %v506 = vsub.s32 %v503, %v505
    %v507 = vrot.slane %v491, %v506
    %v509 = vunpack.c.l.s4 1966171168
    %v510 = vunpack.c.0.s8 %v509
    %v511 = vlaneseq
    %v512 = vshrl.u32 %v511, 7
    %v513 = vsub.s32 %v510, %v512
    %v514 = vrot.slane %v492, %v513
    %v516 = vunpack.c.l.s4 1966171168
    %v517 = vunpack.c.0.s8 %v516
    %v518 = vlaneseq
    %v519 = vshrl.u32 %v518, 7
    %v520 = vsub.s32 %v517, %v519
    %v521 = vrot.slane %v493, %v520
    %v522 = vcombine.low %v500, %v507
    %v523 = vcombine.high %v500, %v507
    %v524 = vcombine.low %v514, %v521
    %v525 = vcombine.high %v514, %v521
    %v527 = vunpack.c.l.s4 1966171168
    %v528 = vunpack.c.0.s8 %v527
    %v529 = vlaneseq
    %v530 = vshrl.u32 %v529, 7
    %v531 = vsub.s32 %v528, %v530
    %v532 = vrot.slane %v522, %v531
    %v534 = vunpack.c.l.s4 1966171168
    %v535 = vunpack.c.0.s8 %v534
    %v536 = vlaneseq
    %v537 = vshrl.u32 %v536, 7
    %v538 = vsub.s32 %v535, %v537
    %v539 = vrot.slane %v523, %v538
    %v541 = vunpack.c.l.s4 1966171168
    %v542 = vunpack.c.0.s8 %v541
    %v543 = vlaneseq
    %v544 = vshrl.u32 %v543, 7
    %v545 = vsub.s32 %v542, %v544
    %v546 = vrot.slane %v524, %v545
    %v548 = vunpack.c.l.s4 1966171168
    %v549 = vunpack.c.0.s8 %v548
    %v550 = vlaneseq
    %v551 = vshrl.u32 %v550, 7
    %v552 = vsub.s32 %v549, %v551
    %v553 = vrot.slane %v525, %v552
    %v554 = vcombine.low %v532, %v546
    %v555 = vcombine.low %v539, %v553
    %564 = vmatprep.subr.mxu0 0.0
    %565 = vmatpush1.msra.mxu0 %v243
    %566 = vmatprep.subr.mxu0 0.0
    %567 = vmatpush1.msra.mxu0 %v242
    %568 = vmatprep.subr.mxu0 0.0
    %569 = vmatpush1.msra.mxu0 %v241
    %570 = vmatprep.subr.mxu0 0.0
    %571 = vmatpush1.msra.mxu0 %v240
    %572 = vmatprep.subr.mxu0 0.0
    %573 = vmatpush1.msra.mxu0 %v239
    %574 = vmatprep.subr.mxu0 0.0
    %575 = vmatpush1.msra.mxu0 %v238
    %576 = vmatprep.subr.mxu0 0.0
    %577 = vmatpush1.msra.mxu0 %v237
    %578 = vmatprep.subr.mxu0 0.0
    %579 = vmatpush1.msra.mxu0 %v236
    %580 = vmatprep.subr.mxu0 0.0
    %581 = vmatpush1.msra.mxu0 %v235
    %582 = vmatprep.subr.mxu0 0.0
    %583 = vmatpush1.msra.mxu0 %v234
    %584 = vmatprep.subr.mxu0 0.0
    %585 = vmatpush1.msra.mxu0 %v233
    %586 = vmatprep.subr.mxu0 0.0
    %587 = vmatpush1.msra.mxu0 %v232
    %588 = vmatprep.subr.mxu0 0.0
    %589 = vmatpush1.msra.mxu0 %v231
    %590 = vmatprep.subr.mxu0 0.0
    %591 = vmatpush1.msra.mxu0 %v230
    %592 = vmatprep.subr.mxu0 0.0
    %593 = vmatpush1.msra.mxu0 %v229
    %594 = vmatprep.subr.mxu0 0.0
    %595 = vmatpush1.msra.mxu0 %v228
    %596 = vmatprep.subr.mxu0 0.0
    %597 = vmatpush2.msra.mxu0 %v259
    %598 = vmatprep.subr.mxu0 0.0
    %599 = vmatpush2.msra.mxu0 %v258
    %600 = vmatprep.subr.mxu0 0.0
    %601 = vmatpush2.msra.mxu0 %v257
    %602 = vmatprep.subr.mxu0 0.0
    %603 = vmatpush2.msra.mxu0 %v256
    %604 = vmatprep.subr.mxu0 0.0
    %605 = vmatpush2.msra.mxu0 %v255
    %606 = vmatprep.subr.mxu0 0.0
    %607 = vmatpush2.msra.mxu0 %v254
    %608 = vmatprep.subr.mxu0 0.0
    %609 = vmatpush2.msra.mxu0 %v253
    %610 = vmatprep.subr.mxu0 0.0
    %611 = vmatpush2.msra.mxu0 %v252
    %612 = vmatprep.subr.mxu0 0.0
    %613 = vmatpush2.msra.mxu0 %v251
    %614 = vmatprep.subr.mxu0 0.0
    %615 = vmatpush2.msra.mxu0 %v250
    %616 = vmatprep.subr.mxu0 0.0
    %617 = vmatpush2.msra.mxu0 %v249
    %618 = vmatprep.subr.mxu0 0.0
    %619 = vmatpush2.msra.mxu0 %v248
    %620 = vmatprep.subr.mxu0 0.0
    %621 = vmatpush2.msra.mxu0 %v247
    %622 = vmatprep.subr.mxu0 0.0
    %623 = vmatpush2.msra.mxu0 %v246
    %624 = vmatprep.subr.mxu0 0.0
    %625 = vmatpush2.msra.mxu0 %v245
    %626 = vmatprep.subr.mxu0 0.0
    %627 = vmatpush2.msra.mxu0 %v244
    %628 = vmatprep.mubr.f32.mxu0 %v357
    %629 = vmatmul.mubr.f32.gmra.mxu0 %v356
    %v630 = vpop.f32.mrf.mxu0
    %v631 = vadd.f32 0.0, %v630
    %v632 = vpop.f32.mrf.mxu0
    %633 = vmatprep.mubr.f32.mxu0 %v423
    %634 = vmatmul.mubr.f32.gmra.mxu0 %v422
    %v635 = vpop.f32.mrf.mxu0
    %v636 = vadd.f32 0.0, %v635
    %v637 = vpop.f32.mrf.mxu0
    %638 = vmatprep.mubr.f32.mxu0 %v489
    %639 = vmatmul.mubr.f32.gmra.mxu0 %v488
    %v640 = vpop.f32.mrf.mxu0
    %v641 = vadd.f32 0.0, %v640
    %v642 = vpop.f32.mrf.mxu0
    %643 = vmatprep.mubr.f32.mxu0 %v555
    %644 = vmatmul.mubr.f32.gmra.mxu0 %v554
    %v645 = vpop.f32.mrf.mxu0
    %v646 = vadd.f32 0.0, %v645
    %v647 = vpop.f32.mrf.mxu0
    %648 = vdwg.mxu0
    %v649 = vmul.f32 %v631, 1.442695
    %v650 = vpow.pop %v649
    %v651 = vmul.f32 %v636, 1.442695
    %v652 = vpow.pop %v651
    %v653 = vmul.f32 %v641, 1.442695
    %v654 = vpow.pop %v653
    %v655 = vmul.f32 %v646, 1.442695
    %v656 = vpow.pop %v655
    %v657 = vsub.f32 0.5, %v650
    %v658 = vsub.f32 0.5, %v652
    %v659 = vsub.f32 0.5, %v654
    %v660 = vsub.f32 0.5, %v656
    %v661 = vmul.f32 %v657, 20.0
    %v662 = vmul.f32 %v658, 20.0
    %v663 = vmul.f32 %v659, 20.0
    %v664 = vmul.f32 %v660, 20.0
    %v665 = vtanh.pop %v661
    %v666 = vtanh.pop %v662
    %v667 = vtanh.pop %v663
    %v668 = vtanh.pop %v664
    %v669 = vmul.f32 %v665, 0.5
    %v670 = vmul.f32 %v666, 0.5
    %v671 = vmul.f32 %v667, 0.5
    %v672 = vmul.f32 %v668, 0.5
    %v673 = vadd.f32 %v669, 0.5
    %v674 = vadd.f32 %v670, 0.5
    %v675 = vadd.f32 %v671, 0.5
    %v676 = vadd.f32 %v672, 0.5
    %v677 = vld [vmem:[%s1] sm:$0xff]
    %v678 = vld [vmem:[%s1 + $0x8] sm:$0xff]
    %v679 = vld [vmem:[%s1 + $0x10] sm:$0xff]
    %v680 = vld [vmem:[%s1 + $0x18] sm:$0xff]
    %vm681 = vcmp.eq.s32.totalorder %v677, 1
    %vm682 = vcmp.eq.s32.totalorder %v678, 1
    %vm683 = vcmp.eq.s32.totalorder %v679, 1
    %vm684 = vcmp.eq.s32.totalorder %v680, 1
    %v685 = vmul.f32 %v673, 0.75
    %v686 = vmul.f32 %v674, 0.75
    %v687 = vmul.f32 %v675, 0.75
    %v688 = vmul.f32 %v676, 0.75
    %vm689 = vcmp.eq.s32.totalorder %v677, 0
    %vm690 = vcmp.eq.s32.totalorder %v678, 0
    %vm691 = vcmp.eq.s32.totalorder %v679, 0
    %vm692 = vcmp.eq.s32.totalorder %v680, 0
    %v693 = vsub.f32 1.0, %v673
    %v694 = vsub.f32 1.0, %v674
    %v695 = vsub.f32 1.0, %v675
    %v696 = vsub.f32 1.0, %v676
    %v697 = vmul.f32 %v693, 0.25
    %v698 = vmul.f32 %v694, 0.25
    %v699 = vmul.f32 %v695, 0.25
    %v700 = vmul.f32 %v696, 0.25
    %v701 = vsel %vm689, %v697, 0.0
    %v702 = vsel %vm690, %v698, 0.0
    %v703 = vsel %vm691, %v699, 0.0
    %v704 = vsel %vm692, %v700, 0.0
    %v705 = vsel %vm681, %v685, %v701
    %v706 = vsel %vm682, %v686, %v702
    %v707 = vsel %vm683, %v687, %v703
    %v708 = vsel %vm684, %v688, %v704
    %s709 = smul.u32 0, 32
    %v710 = vstv %s709
    %v711 = vadd.s32 %v128, %v710
    %v712 = vadd.s32 %v129, %v710
    %v713 = vadd.s32 %v130, %v710
    %v714 = vadd.s32 %v131, %v710
    %v715 = vmul.u32 %v711, 128
    %v716 = vmul.u32 %v712, 128
    %v717 = vmul.u32 %v713, 128
    %v718 = vmul.u32 %v714, 128
    %v719 = vadd.s32 %v715, %v161
    %v720 = vadd.s32 %v716, %v161
    %v721 = vadd.s32 %v717, %v161
    %v722 = vadd.s32 %v718, %v161
    %vm723 = vcmp.lt.s32.totalorder %v719, 8
    %vm724 = vcmp.lt.s32.totalorder %v720, 8
    %vm725 = vcmp.lt.s32.totalorder %v721, 8
    %vm726 = vcmp.lt.s32.totalorder %v722, 8
    %v727 = vsel %vm723, %v705, 0.0
    %v728 = vsel %vm724, %v706, 0.0
    %v729 = vsel %vm725, %v707, 0.0
    %v730 = vsel %vm726, %v708, 0.0
    %v731 = vld [vmem:[#allocation2] sm:$0xff]
    %v732 = vadd.f32 %v727, %v728
    %v733 = vadd.f32 %v732, %v729
    %v734 = vadd.f32 %v733, %v730
    %v735 = vadd.f32 %v731, %v734
    %736 = vst [vmem:[#allocation2] sm:$0xff] %v735
    // Predicated region
    $region18: #{tpu_custom_call.1} parent=1 // pred_check
      %p737 = pneg %p26
    $region19: #{tpu_custom_call.1} parent=1 // pred_check_branch
      %739 = sbr.rel (%p737) target = $region21
    $region20: #{tpu_custom_call.1} parent=1 // pred_region
      %v740 = vld [vmem:[#allocation2] sm:$0xff]
      %741 = vadd.xlane.f32.xlu0 %v740
      %v742 = vpop.xlane.xlu0 %741
      %v743 = vrot.slane %v742, 4
      %v744 = vadd.f32 %v742, %v743
      %v745 = vrot.slane %v744, 2
      %v746 = vadd.f32 %v744, %v745
      %v747 = vrot.slane %v746, 1
      %v748 = vadd.f32 %v746, %v747
      %s749 = vtos %v748
      %v750 = vrcp.pop 8.0
      %s751 = vtos %v750
      %s752 = smul.f32 %s749, %s751
      %s753 = scalar_lea.smem [#allocation6], 0
      %754 = sst [smem:[%s753]] %s752
    $region21: #{tpu_custom_call.1} parent=1 // pred_fallthru
      _
    // Predicated region
    $region22: #{tpu_custom_call.1} parent=1 // pred_check
      _
    $region23: #{tpu_custom_call.1} parent=1 // pred_check_branch
      %756 = sbr.rel (0) target = $region25
    $region24: #{tpu_custom_call.1} parent=1 // pred_region
      %s758 = ssub.s32 16, 16
      %759 = vsyncadd [#allocation5], %s758
      %762 = dma.smem_to_hbm [#allocation6], 16, %s2, [#allocation5]
    $region25: #{tpu_custom_call.1} parent=1 // pred_fallthru
      _
    // Predicated region
    $region26: #{tpu_custom_call.1} parent=1 // pred_check
      _
    $region27: #{tpu_custom_call.1} parent=1 // pred_check_branch
      %764 = sbr.rel (0) target = $region29
    $region28: #{tpu_custom_call.1} parent=1 // pred_region
      %765 = dma.done [#allocation5], 16
    $region29: #{tpu_custom_call.1} parent=1 // pred_fallthru
      _
    %766 = sfence
    %767 = vsyncpa [#allocation4], 1
    %768 = vsyncpa [#allocation5], 1

</llo_original>
